<compile_context>
chip_gen: v7x
topology: tpu7x:2x2x1
jax: 0.10.0
libtpu: 0.0.40
codegen_flags: <defaults>
</compile_context>

<pallas_src>
import functools

import jax
import jax.numpy as jnp
from jax.experimental import pallas as pl
from jax.experimental.pallas import tpu as pltpu


_LANE = 128                              # lane width / MXU alignment granule
_FUSED_VMEM_BUDGET = 40 * 1024 * 1024    # keep headroom under v7x's 64 MiB physical VMEM


def _round_up(x: int, m: int) -> int:
    return (x + m - 1) // m * m


def _pad2d(a, rows: int, cols: int):
    r, c = a.shape
    if r == rows and c == cols:
        return a
    return jnp.pad(a, ((0, rows - r), (0, cols - c)))


def _clamp_vmem_limit(est_bytes: int) -> int:
    # Explicit scoped-VMEM limit with margin; capped so it is safe on v7x (64 MiB total).
    return int(min(max(est_bytes + (4 << 20), 16 << 20), 48 << 20))


# ---------------------------------------------------------------------------
# Fused multi-layer kernel: hidden activations never leave VMEM.
# ---------------------------------------------------------------------------
def _mlp_fused_kernel(*refs, num_layers: int):
    # refs = (x_ref, w0, b0, w1, b1, ..., w_{L-1}, b_{L-1}, o_ref)
    x_ref = refs[0]
    o_ref = refs[-1]
    h = x_ref[...]                                    # (tm, d0_pad) bf16
    for li in range(num_layers):
        w_ref = refs[1 + 2 * li]
        b_ref = refs[2 + 2 * li]
        acc = jnp.dot(h, w_ref[...], preferred_element_type=jnp.float32)
        acc = acc + b_ref[...]                        # f32 epilogue
        if 0 < li < num_layers - 1:                   # middle layers: Linear->Dropout(0)->ReLU
            acc = jnp.maximum(acc, 0.0)
        if li < num_layers - 1:
            h = acc.astype(jnp.bfloat16)              # next layer's MXU operand
        else:
            o_ref[...] = acc.astype(o_ref.dtype)      # lane-dense (128-multiple) store


def _fused_vmem_estimate(tm: int, dims_pad) -> int:
    bytes_ = 2 * tm * dims_pad[0] * 2                       # double-buffered bf16 x tile
    for d_in, d_out in zip(dims_pad[:-1], dims_pad[1:]):
        bytes_ += 2 * d_in * d_out * 2                      # bf16 weight (x2 buffering)
        bytes_ += 2 * d_out * 4                             # f32 bias
    bytes_ += 2 * tm * dims_pad[-1] * 4                     # f32 output tile
    bytes_ += 2 * tm * max(dims_pad) * 4                    # live activations (f32 + bf16)
    return bytes_


def _mlp_fused(x2d, params, dims_pad, *, tm: int):
    M = x2d.shape[0]
    num_layers = len(params)
    out_dim = params[-1][0].shape[1]
    m_pad = _round_up(M, tm)

    inputs = [_pad2d(x2d, m_pad, dims_pad[0]).astype(jnp.bfloat16)]
    in_specs = [pl.BlockSpec((tm, dims_pad[0]), lambda i: (i, 0))]
    flops = 0
    bytes_accessed = m_pad * dims_pad[0] * 2
    for li, (w, b) in enumerate(params):
        d_in, d_out = dims_pad[li], dims_pad[li + 1]
        w_p = _pad2d(w, d_in, d_out).astype(jnp.bfloat16)
        b_p = jnp.pad(b, (0, d_out - b.shape[0])).reshape(1, d_out).astype(jnp.float32)
        inputs += [w_p, b_p]
        in_specs += [
            pl.BlockSpec((d_in, d_out), lambda i: (0, 0)),   # whole (padded) weight resident
            pl.BlockSpec((1, d_out), lambda i: (0, 0)),
        ]
        flops += 2 * m_pad * d_in * d_out
        bytes_accessed += d_in * d_out * 2 + d_out * 4
    bytes_accessed += m_pad * dims_pad[-1] * 4

    out = pl.pallas_call(
        functools.partial(_mlp_fused_kernel, num_layers=num_layers),
        out_shape=jax.ShapeDtypeStruct((m_pad, dims_pad[-1]), jnp.float32),
        grid_spec=pltpu.PrefetchScalarGridSpec(
            num_scalar_prefetch=0,
            grid=(m_pad // tm,),
            in_specs=in_specs,
            out_specs=pl.BlockSpec((tm, dims_pad[-1]), lambda i: (i, 0)),
        ),
        compiler_params=pltpu.CompilerParams(
            dimension_semantics=("parallel",),
            vmem_limit_bytes=_clamp_vmem_limit(_fused_vmem_estimate(tm, dims_pad)),
        ),
        cost_estimate=pl.CostEstimate(
            flops=flops, transcendentals=0, bytes_accessed=bytes_accessed),
    )(*inputs)
    return out[:M, :out_dim]


# ---------------------------------------------------------------------------
# Fallback: single Linear(+ReLU) with (M, N, K) tiling and f32 VMEM accumulator.
# ---------------------------------------------------------------------------
def _linear_tiled_kernel(x_ref, w_ref, b_ref, o_ref, acc_ref, *, apply_relu: bool):
    k = pl.program_id(2)

    @pl.when(k == 0)
    def _():
        acc_ref[...] = jnp.zeros_like(acc_ref)

    acc_ref[...] += jnp.dot(x_ref[...], w_ref[...], preferred_element_type=jnp.float32)

    @pl.when(k == pl.num_programs(2) - 1)
    def _():
        out = acc_ref[...] + b_ref[...]               # f32 epilogue
        if apply_relu:
            out = jnp.maximum(out, 0.0)
        o_ref[...] = out.astype(o_ref.dtype)


def linear_pallas_tiled(x2d, w, b, *, apply_relu: bool,
                        tm: int = 256, tn: int = 256, tk: int = 256):
    """y = relu?(x @ w + b).  x:(M,K) f32, w:(K,N) f32, b:(N,) f32 -> (M,N) f32."""
    M, K = x2d.shape
    N = w.shape[1]
    # Clamp tiles to the 128-aligned problem size (no over-padding for tiny inputs),
    # otherwise keep 256-sized MXU-aligned tiles.
    tm = min(tm, _round_up(M, _LANE))
    tk = min(tk, _round_up(K, _LANE))
    tn = min(tn, _round_up(N, _LANE))
    m_pad, k_pad, n_pad = _round_up(M, tm), _round_up(K, tk), _round_up(N, tn)

    x_p = _pad2d(x2d, m_pad, k_pad).astype(jnp.bfloat16)
    w_p = _pad2d(w, k_pad, n_pad).astype(jnp.bfloat16)
    b_p = jnp.pad(b, (0, n_pad - N)).reshape(1, n_pad).astype(jnp.float32)

    vmem_est = (2 * (tm * tk * 2 + tk * tn * 2 + tn * 4)
                + 2 * tm * tn * 4 + tm * tn * 4)
    out = pl.pallas_call(
        functools.partial(_linear_tiled_kernel, apply_relu=apply_relu),
        out_shape=jax.ShapeDtypeStruct((m_pad, n_pad), jnp.float32),
        grid_spec=pltpu.PrefetchScalarGridSpec(
            num_scalar_prefetch=0,
            grid=(m_pad // tm, n_pad // tn, k_pad // tk),   # reduction axis last
            in_specs=[
                pl.BlockSpec((tm, tk), lambda i, j, k: (i, k)),
                pl.BlockSpec((tk, tn), lambda i, j, k: (k, j)),
                pl.BlockSpec((1, tn), lambda i, j, k: (0, j)),
            ],
            out_specs=pl.BlockSpec((tm, tn), lambda i, j, k: (i, j)),
            scratch_shapes=[pltpu.VMEM((tm, tn), jnp.float32)],
        ),
        compiler_params=pltpu.CompilerParams(
            dimension_semantics=("parallel", "parallel", "arbitrary"),
            vmem_limit_bytes=_clamp_vmem_limit(vmem_est),
        ),
        cost_estimate=pl.CostEstimate(
            flops=2 * m_pad * k_pad * n_pad,
            transcendentals=0,
            bytes_accessed=(m_pad * k_pad * 2 + k_pad * n_pad * 2
                            + n_pad * 4 + m_pad * n_pad * 4)),
    )(x_p, w_p, b_p)
    return out[:M, :N]


# ---------------------------------------------------------------------------
# Module-level forward + params + reference.
# ---------------------------------------------------------------------------
def mlp_forward(x, params, *, tm: int = 256, force_unfused: bool = False):
    """x: (B, S, input_dim) -> (B, S, output_dim).  Dropout p=0.0 (identity)."""
    B, S, d_in = x.shape
    M = B * S
    out_dim = params[-1][0].shape[1]
    dims = [d_in] + [w.shape[1] for w, _ in params]
    dims_pad = [_round_up(d, _LANE) for d in dims]
    tm_eff = min(tm, _round_up(M, _LANE))

    h = x.reshape(M, d_in)
    if (not force_unfused) and _fused_vmem_estimate(tm_eff, dims_pad) <= _FUSED_VMEM_BUDGET:
        out2d = _mlp_fused(h, params, dims_pad, tm=tm_eff)
    else:
        # TODO(synk): for layers whose weights exceed the VMEM budget we fall back to
        # per-layer K/N-tiled matmuls (activations round-trip HBM); an emit_pipeline
        # weight-streaming variant inside one kernel would keep activations resident too.
        n = len(params)
        for li, (w, b) in enumerate(params):
            h = linear_pallas_tiled(h, w, b, apply_relu=(0 < li < n - 1), tm=tm)
        out2d = h
    return out2d.reshape(B, S, out_dim)


def init_mlp_params(key, input_dim, dim_feedforward, output_dim, num_layers):
    """Deterministic init mimicking torch.nn.Linear default (U[-1/sqrt(fan_in), +])."""
    dims = [input_dim] + [dim_feedforward] * (num_layers - 1) + [output_dim]
    params = []
    for li in range(num_layers):
        fan_in, fan_out = dims[li], dims[li + 1]
        key, kw, kb = jax.random.split(key, 3)
        bound = 1.0 / jnp.sqrt(fan_in)
        # Stored as (in, out) so the kernel computes x @ W (== x @ W_torch.T).
        w = jax.random.uniform(kw, (fan_in, fan_out), jnp.float32, -bound, bound)
        b = jax.random.uniform(kb, (fan_out,), jnp.float32, -bound, bound)
        params.append((w, b))
    return params


def mlp_reference(x, params):
    """Plain-JAX reference emulating the kernel's bf16-operand / f32-accumulate matmuls."""
    B, S, d_in = x.shape
    h = x.reshape(B * S, d_in)
    n = len(params)
    for li, (w, b) in enumerate(params):
        h = jnp.dot(h.astype(jnp.bfloat16), w.astype(jnp.bfloat16),
                    preferred_element_type=jnp.float32) + b
        if 0 < li < n - 1:
            h = jnp.maximum(h, 0.0)
    return h.reshape(B, S, -1)


if __name__ == "__main__":
    # Small, module-consistent shapes.
    batch, seq = 2, 8
    input_dim, dim_feedforward, output_dim = 16, 32, 16
    num_layers = 3  # exercises the middle Linear -> Dropout(0) -> ReLU block

    key = jax.random.PRNGKey(0)
    key, kx = jax.random.split(key)
    x = jax.random.normal(kx, (batch, seq, input_dim), jnp.float32)
    params = init_mlp_params(key, input_dim, dim_feedforward, output_dim, num_layers)

    ref = mlp_reference(x, params)

    # Main path: fused single-kernel MLP (activations stay in VMEM).
    out_fused = jax.block_until_ready(mlp_forward(x, params))
    assert out_fused.shape == (batch, seq, output_dim), out_fused.shape
    assert jnp.allclose(out_fused, ref, atol=1e-2, rtol=1e-2), "fused mismatch vs reference"

    # Fallback path: per-layer (M, N, K)-tiled linears with accumulator.
    out_tiled = jax.block_until_ready(mlp_forward(x, params, force_unfused=True))
    assert out_tiled.shape == (batch, seq, output_dim), out_tiled.shape
    assert jnp.allclose(out_tiled, ref, atol=1e-2, rtol=1e-2), "tiled mismatch vs reference"

    print("KERNEL_OK")
</pallas_src>

<mosaic_0001>
module attributes {stable_mosaic.version = 11 : i64} {
  func.func @_mlp_fused_kernel(%arg0: i32, %arg1: memref<128x128xbf16, #tpu.memory_space<vmem>>, %arg2: memref<128x128xbf16, #tpu.memory_space<vmem>>, %arg3: memref<1x128xf32, #tpu.memory_space<vmem>>, %arg4: memref<128x128xbf16, #tpu.memory_space<vmem>>, %arg5: memref<1x128xf32, #tpu.memory_space<vmem>>, %arg6: memref<128x128xbf16, #tpu.memory_space<vmem>>, %arg7: memref<1x128xf32, #tpu.memory_space<vmem>>, %arg8: memref<128x128xf32, #tpu.memory_space<vmem>>) attributes {dimension_semantics = [#tpu.dimension_semantics<parallel>], iteration_bounds = array<i64: 1>, scalar_prefetch = 0 : i64, scratch_operands = 0 : i64, tpu.core_type = #tpu.core_type<tc>, window_params = [{transform_indices = @transform_0, window_bounds = array<i64: 128, 128>}, {pipeline_mode = #tpu.pipeline_mode<synchronous>, transform_indices = @transform_1, window_bounds = array<i64: 128, 128>}, {pipeline_mode = #tpu.pipeline_mode<synchronous>, transform_indices = @transform_2, window_bounds = array<i64: 1, 128>}, {pipeline_mode = #tpu.pipeline_mode<synchronous>, transform_indices = @transform_3, window_bounds = array<i64: 128, 128>}, {pipeline_mode = #tpu.pipeline_mode<synchronous>, transform_indices = @transform_4, window_bounds = array<i64: 1, 128>}, {pipeline_mode = #tpu.pipeline_mode<synchronous>, transform_indices = @transform_5, window_bounds = array<i64: 128, 128>}, {pipeline_mode = #tpu.pipeline_mode<synchronous>, transform_indices = @transform_6, window_bounds = array<i64: 1, 128>}, {transform_indices = @transform_7, window_bounds = array<i64: 128, 128>}]} {
    %c0 = arith.constant 0 : index
    %c0_0 = arith.constant 0 : index
    %0 = vector.load %arg1[%c0, %c0_0] : memref<128x128xbf16, #tpu.memory_space<vmem>>, vector<128x128xbf16>
    %c0_1 = arith.constant 0 : index
    %c0_2 = arith.constant 0 : index
    %1 = vector.load %arg2[%c0_1, %c0_2] : memref<128x128xbf16, #tpu.memory_space<vmem>>, vector<128x128xbf16>
    %cst = arith.constant dense<0.000000e+00> : vector<128x128xf32>
    %2 = tpu.matmul %0, %1, %cst {dimension_numbers = #tpu.dot_dimension_numbers<[1], [0], [0], [1], [0, 0, 1, 1], [], []>} : vector<128x128xbf16>, vector<128x128xbf16>, vector<128x128xf32> -> vector<128x128xf32>
    %c0_3 = arith.constant 0 : index
    %c0_4 = arith.constant 0 : index
    %3 = vector.load %arg3[%c0_3, %c0_4] : memref<1x128xf32, #tpu.memory_space<vmem>>, vector<1x128xf32>
    %4 = vector.broadcast %3 : vector<1x128xf32> to vector<128x128xf32>
    %5 = arith.addf %2, %4 : vector<128x128xf32>
    %6 = arith.truncf %5 : vector<128x128xf32> to vector<128x128xbf16>
    %c0_5 = arith.constant 0 : index
    %c0_6 = arith.constant 0 : index
    %7 = vector.load %arg4[%c0_5, %c0_6] : memref<128x128xbf16, #tpu.memory_space<vmem>>, vector<128x128xbf16>
    %cst_7 = arith.constant dense<0.000000e+00> : vector<128x128xf32>
    %8 = tpu.matmul %6, %7, %cst_7 {dimension_numbers = #tpu.dot_dimension_numbers<[1], [0], [0], [1], [0, 0, 1, 1], [], []>} : vector<128x128xbf16>, vector<128x128xbf16>, vector<128x128xf32> -> vector<128x128xf32>
    %c0_8 = arith.constant 0 : index
    %c0_9 = arith.constant 0 : index
    %9 = vector.load %arg5[%c0_8, %c0_9] : memref<1x128xf32, #tpu.memory_space<vmem>>, vector<1x128xf32>
    %10 = vector.broadcast %9 : vector<1x128xf32> to vector<128x128xf32>
    %11 = arith.addf %8, %10 : vector<128x128xf32>
    %cst_10 = arith.constant 0.000000e+00 : f32
    %12 = vector.broadcast %cst_10 : f32 to vector<128x128xf32>
    %13 = arith.maximumf %11, %12 : vector<128x128xf32>
    %14 = arith.truncf %13 : vector<128x128xf32> to vector<128x128xbf16>
    %c0_11 = arith.constant 0 : index
    %c0_12 = arith.constant 0 : index
    %15 = vector.load %arg6[%c0_11, %c0_12] : memref<128x128xbf16, #tpu.memory_space<vmem>>, vector<128x128xbf16>
    %cst_13 = arith.constant dense<0.000000e+00> : vector<128x128xf32>
    %16 = tpu.matmul %14, %15, %cst_13 {dimension_numbers = #tpu.dot_dimension_numbers<[1], [0], [0], [1], [0, 0, 1, 1], [], []>} : vector<128x128xbf16>, vector<128x128xbf16>, vector<128x128xf32> -> vector<128x128xf32>
    %c0_14 = arith.constant 0 : index
    %c0_15 = arith.constant 0 : index
    %17 = vector.load %arg7[%c0_14, %c0_15] : memref<1x128xf32, #tpu.memory_space<vmem>>, vector<1x128xf32>
    %18 = vector.broadcast %17 : vector<1x128xf32> to vector<128x128xf32>
    %19 = arith.addf %16, %18 : vector<128x128xf32>
    %c0_16 = arith.constant 0 : index
    %c0_17 = arith.constant 0 : index
    %20 = vector.load %arg8[%c0_16, %c0_17] : memref<128x128xf32, #tpu.memory_space<vmem>>, vector<128x128xf32>
    tpu.vector_store %arg8[%c0_16, %c0_17], %19 {strides = array<i32>} : memref<128x128xf32, #tpu.memory_space<vmem>>, vector<128x128xf32>,
    return
  }
  func.func @transform_0(%arg0: i32) -> (i32, i32) {
    %c0_i32 = arith.constant 0 : i32
    %c0_i32_0 = arith.constant 0 : i32
    return %arg0, %c0_i32 : i32, i32
  }
  func.func @transform_1(%arg0: i32) -> (i32, i32) {
    %c0_i32 = arith.constant 0 : i32
    %c0_i32_0 = arith.constant 0 : i32
    %c0_i32_1 = arith.constant 0 : i32
    return %c0_i32, %c0_i32_0 : i32, i32
  }
  func.func @transform_2(%arg0: i32) -> (i32, i32) {
    %c0_i32 = arith.constant 0 : i32
    %c0_i32_0 = arith.constant 0 : i32
    %c0_i32_1 = arith.constant 0 : i32
    return %c0_i32, %c0_i32_0 : i32, i32
  }
  func.func @transform_3(%arg0: i32) -> (i32, i32) {
    %c0_i32 = arith.constant 0 : i32
    %c0_i32_0 = arith.constant 0 : i32
    %c0_i32_1 = arith.constant 0 : i32
    return %c0_i32, %c0_i32_0 : i32, i32
  }
  func.func @transform_4(%arg0: i32) -> (i32, i32) {
    %c0_i32 = arith.constant 0 : i32
    %c0_i32_0 = arith.constant 0 : i32
    %c0_i32_1 = arith.constant 0 : i32
    return %c0_i32, %c0_i32_0 : i32, i32
  }
  func.func @transform_5(%arg0: i32) -> (i32, i32) {
    %c0_i32 = arith.constant 0 : i32
    %c0_i32_0 = arith.constant 0 : i32
    %c0_i32_1 = arith.constant 0 : i32
    return %c0_i32, %c0_i32_0 : i32, i32
  }
  func.func @transform_6(%arg0: i32) -> (i32, i32) {
    %c0_i32 = arith.constant 0 : i32
    %c0_i32_0 = arith.constant 0 : i32
    %c0_i32_1 = arith.constant 0 : i32
    return %c0_i32, %c0_i32_0 : i32, i32
  }
  func.func @transform_7(%arg0: i32) -> (i32, i32) {
    %c0_i32 = arith.constant 0 : i32
    %c0_i32_0 = arith.constant 0 : i32
    return %arg0, %c0_i32 : i32, i32
  }
}

</mosaic_0001>

<llo_original>
// kernel: tpu_custom_call.1
$region0: #{tpu_custom_call.1}
  #allocation0 [shape = 'u32[]', space=smem, size = 0x4, offset = 0x4, fixed_abs, tag = 'smem constant byte address 0x4 - core index']
  #allocation1 [shape = 'u32[144,128]{1,0:T(1,128)}', space=vmem, size = 0x12000, scoped, tag = 'internal scratch']
  %s0 = inlined_call_operand.hbm [shape: bf16[128,128], index: 0, kind: input, shape index: {}]
  %s1 = inlined_call_operand.hbm [shape: bf16[128,128], index: 1, kind: input, shape index: {}]
  %s2 = inlined_call_operand.vmem [shape: f32[1,128], index: 2, kind: input, shape index: {}]
  %s3 = inlined_call_operand.hbm [shape: bf16[128,128], index: 3, kind: input, shape index: {}]
  %s4 = inlined_call_operand.vmem [shape: f32[1,128], index: 4, kind: input, shape index: {}]
  %s5 = inlined_call_operand.hbm [shape: bf16[128,128], index: 5, kind: input, shape index: {}]
  %s6 = inlined_call_operand.vmem [shape: f32[1,128], index: 6, kind: input, shape index: {}]
  %s7 = inlined_call_operand.hbm [shape: f32[128,128], index: 7, kind: output, shape index: {}]
  %s8 = sld [smem:[#allocation0]]
  $region54: #{tpu_custom_call.1} parent=0
    _
  %s10 = ssub.s32 1, %s8
  %s11 = scalar_select 0, %s10, %s8
  $region1: #{tpu_custom_call.1} parent=0
    #allocation2 [shape = 'u8[32768]{0}', space=vmem, size = 0x8000, scoped, tag = 'input window, operand 0, single buffered']
    #allocation3 [shape = 's32[1]{0}', space=sflag, size = 0x4, scoped, tag = 'scoped memory for tpu_custom_call.1']
    #allocation4 [shape = 's32[1]{0}', space=sflag, size = 0x4, scoped, tag = 'scoped memory for tpu_custom_call.1']
    #allocation5 [shape = 'u8[32768]{0}', space=vmem, size = 0x8000, scoped, tag = 'input window, operand 1, single buffered']
    #allocation6 [shape = 's32[1]{0}', space=sflag, size = 0x4, scoped, tag = 'scoped memory for tpu_custom_call.1']
    #allocation7 [shape = 'u8[32768]{0}', space=vmem, size = 0x8000, scoped, tag = 'input window, operand 3, single buffered']
    #allocation8 [shape = 'u8[32768]{0}', space=vmem, size = 0x8000, scoped, tag = 'input window, operand 5, single buffered']
    #allocation9 [shape = 's32[1]{0}', space=sflag, size = 0x4, scoped, tag = 'scoped memory for tpu_custom_call.1']
    #allocation10 [shape = 'u8[65536]{0}', space=vmem, size = 0x10000, scoped, tag = 'output window, operand 0, single buffered']
    %12 = vsyncpa [#allocation3], 0
    %13 = vsyncpa [#allocation6], 0
    %14 = vsyncpa [#allocation9], 0
    %15 = vsyncpa [#allocation4], 0
    // Predicated region
    $region2: #{tpu_custom_call.1} parent=1 // pred_check
      _
    $region3: #{tpu_custom_call.1} parent=1 // pred_check_branch
      %17 = sbr.rel (0) target = $region5
    $region4: #{tpu_custom_call.1} parent=1 // pred_region
      %s19 = ssub.s32 1024, 1024
      %20 = vsyncadd [#allocation3], %s19
      %s21 = sshll.u32 [#allocation2], 4
      %s22 = int_to_ptr.vmem [resolvable:$true] %s21
      %27 = dma.hbm_to_vmem [thread:$0]  %s0, 1024, %s22, [#allocation3], 64, 64, 4
    $region5: #{tpu_custom_call.1} parent=1 // pred_fallthru
      _
    // Predicated region
    $region6: #{tpu_custom_call.1} parent=1 // pred_check
      _
    $region7: #{tpu_custom_call.1} parent=1 // pred_check_branch
      %29 = sbr.rel (0) target = $region9
    $region8: #{tpu_custom_call.1} parent=1 // pred_region
      %s31 = ssub.s32 1024, 1024
      %32 = vsyncadd [#allocation6], %s31
      %s33 = sshll.u32 [#allocation5], 4
      %s34 = int_to_ptr.vmem [resolvable:$true] %s33
      %39 = dma.hbm_to_vmem [thread:$0]  %s1, 1024, %s34, [#allocation6], 64, 64, 4
    $region9: #{tpu_custom_call.1} parent=1 // pred_fallthru
      _
    // Predicated region
    $region10: #{tpu_custom_call.1} parent=1 // pred_check
      _
    $region11: #{tpu_custom_call.1} parent=1 // pred_check_branch
      %41 = sbr.rel (0) target = $region13
    $region12: #{tpu_custom_call.1} parent=1 // pred_region
      _
    $region13: #{tpu_custom_call.1} parent=1 // pred_fallthru
      _
    // Predicated region
    $region14: #{tpu_custom_call.1} parent=1 // pred_check
      _
    $region15: #{tpu_custom_call.1} parent=1 // pred_check_branch
      %43 = sbr.rel (0) target = $region17
    $region16: #{tpu_custom_call.1} parent=1 // pred_region
      %s45 = ssub.s32 1024, 1024
      %46 = vsyncadd [#allocation6], %s45
      %s47 = sshll.u32 [#allocation7], 4
      %s48 = int_to_ptr.vmem [resolvable:$true] %s47
      %53 = dma.hbm_to_vmem [thread:$0]  %s3, 1024, %s48, [#allocation6], 64, 64, 4
    $region17: #{tpu_custom_call.1} parent=1 // pred_fallthru
      _
    // Predicated region
    $region18: #{tpu_custom_call.1} parent=1 // pred_check
      _
    $region19: #{tpu_custom_call.1} parent=1 // pred_check_branch
      %55 = sbr.rel (0) target = $region21
    $region20: #{tpu_custom_call.1} parent=1 // pred_region
      _
    $region21: #{tpu_custom_call.1} parent=1 // pred_fallthru
      _
    // Predicated region
    $region22: #{tpu_custom_call.1} parent=1 // pred_check
      _
    $region23: #{tpu_custom_call.1} parent=1 // pred_check_branch
      %57 = sbr.rel (0) target = $region25
    $region24: #{tpu_custom_call.1} parent=1 // pred_region
      %s59 = ssub.s32 1024, 1024
      %60 = vsyncadd [#allocation9], %s59
      %s61 = sshll.u32 [#allocation8], 4
      %s62 = int_to_ptr.vmem [resolvable:$true] %s61
      %67 = dma.hbm_to_vmem [thread:$0]  %s5, 1024, %s62, [#allocation9], 64, 64, 4
    $region25: #{tpu_custom_call.1} parent=1 // pred_fallthru
      _
    // Predicated region
    $region26: #{tpu_custom_call.1} parent=1 // pred_check
      _
    $region27: #{tpu_custom_call.1} parent=1 // pred_check_branch
      %69 = sbr.rel (0) target = $region29
    $region28: #{tpu_custom_call.1} parent=1 // pred_region
      _
    $region29: #{tpu_custom_call.1} parent=1 // pred_fallthru
      _
    // Predicated region
    $region30: #{tpu_custom_call.1} parent=1 // pred_check
      _
    $region31: #{tpu_custom_call.1} parent=1 // pred_check_branch
      %71 = sbr.rel (0) target = $region33
    $region32: #{tpu_custom_call.1} parent=1 // pred_region
      %72 = dma.done [#allocation3], 1024
    $region33: #{tpu_custom_call.1} parent=1 // pred_fallthru
      _
    // Predicated region
    $region34: #{tpu_custom_call.1} parent=1 // pred_check
      _
    $region35: #{tpu_custom_call.1} parent=1 // pred_check_branch
      %74 = sbr.rel (0) target = $region37
    $region36: #{tpu_custom_call.1} parent=1 // pred_region
      %75 = dma.done [#allocation6], 1024
    $region37: #{tpu_custom_call.1} parent=1 // pred_fallthru
      _
    // Predicated region
    $region38: #{tpu_custom_call.1} parent=1 // pred_check
      _
    $region39: #{tpu_custom_call.1} parent=1 // pred_check_branch
      %77 = sbr.rel (0) target = $region41
    $region40: #{tpu_custom_call.1} parent=1 // pred_region
      %78 = dma.done [#allocation6], 1024
    $region41: #{tpu_custom_call.1} parent=1 // pred_fallthru
      _
    // Predicated region
    $region42: #{tpu_custom_call.1} parent=1 // pred_check
      _
    $region43: #{tpu_custom_call.1} parent=1 // pred_check_branch
      %80 = sbr.rel (0) target = $region45
    $region44: #{tpu_custom_call.1} parent=1 // pred_region
      %81 = dma.done [#allocation9], 1024
    $region45: #{tpu_custom_call.1} parent=1 // pred_fallthru
      _
    %v83 = vld [vmem:[#allocation2] sm:$0xf]
    %v84 = vld [vmem:[#allocation2 + $0x4] sm:$0xf]
    %v85 = vld [vmem:[#allocation2 + $0x8] sm:$0xf]
    %v86 = vld [vmem:[#allocation2 + $0xc] sm:$0xf]
    %v87 = vld [vmem:[#allocation2 + $0x10] sm:$0xf]
    %v88 = vld [vmem:[#allocation2 + $0x14] sm:$0xf]
    %v89 = vld [vmem:[#allocation2 + $0x18] sm:$0xf]
    %v90 = vld [vmem:[#allocation2 + $0x1c] sm:$0xf]
    %v91 = vld [vmem:[#allocation2 + $0x20] sm:$0xf]
    %v92 = vld [vmem:[#allocation2 + $0x24] sm:$0xf]
    %v93 = vld [vmem:[#allocation2 + $0x28] sm:$0xf]
    %v94 = vld [vmem:[#allocation2 + $0x2c] sm:$0xf]
    %v95 = vld [vmem:[#allocation2 + $0x30] sm:$0xf]
    %v96 = vld [vmem:[#allocation2 + $0x34] sm:$0xf]
    %v97 = vld [vmem:[#allocation2 + $0x38] sm:$0xf]
    %v98 = vld [vmem:[#allocation2 + $0x3c] sm:$0xf]
    %v99 = vld [vmem:[#allocation5] sm:$0xf]
    %v100 = vld [vmem:[#allocation5 + $0x4] sm:$0xf]
    %v101 = vld [vmem:[#allocation5 + $0x8] sm:$0xf]
    %v102 = vld [vmem:[#allocation5 + $0xc] sm:$0xf]
    %v103 = vld [vmem:[#allocation5 + $0x10] sm:$0xf]
    %v104 = vld [vmem:[#allocation5 + $0x14] sm:$0xf]
    %v105 = vld [vmem:[#allocation5 + $0x18] sm:$0xf]
    %v106 = vld [vmem:[#allocation5 + $0x1c] sm:$0xf]
    %v107 = vld [vmem:[#allocation5 + $0x20] sm:$0xf]
    %v108 = vld [vmem:[#allocation5 + $0x24] sm:$0xf]
    %v109 = vld [vmem:[#allocation5 + $0x28] sm:$0xf]
    %v110 = vld [vmem:[#allocation5 + $0x2c] sm:$0xf]
    %v111 = vld [vmem:[#allocation5 + $0x30] sm:$0xf]
    %v112 = vld [vmem:[#allocation5 + $0x34] sm:$0xf]
    %v113 = vld [vmem:[#allocation5 + $0x38] sm:$0xf]
    %v114 = vld [vmem:[#allocation5 + $0x3c] sm:$0xf]
    %v115 = vld [vmem:[%s2] sm:$0x1]
    %v117 = vlaneseq
    %v118 = vshrl.u32 %v117, 7
    %v119 = vsub.s32 0, %v118
    %v120 = vrot.slane %v115, %v119
    %v138 = vunpack.c.l.b16 %v83
    %v139 = vunpack.c.l.b16 %v84
    %v140 = vunpack.c.l.b16 %v85
    %v141 = vunpack.c.l.b16 %v86
    %v142 = vunpack.c.l.b16 %v87
    %v143 = vunpack.c.l.b16 %v88
    %v144 = vunpack.c.l.b16 %v89
    %v145 = vunpack.c.l.b16 %v90
    %v146 = vunpack.c.l.b16 %v91
    %v147 = vunpack.c.l.b16 %v92
    %v148 = vunpack.c.l.b16 %v93
    %v149 = vunpack.c.l.b16 %v94
    %v150 = vunpack.c.l.b16 %v95
    %v151 = vunpack.c.l.b16 %v96
    %v152 = vunpack.c.l.b16 %v97
    %v153 = vunpack.c.l.b16 %v98
    %v154 = vpack.c.b16 %v139, %v138
    %v155 = vpack.c.b16 %v141, %v140
    %v156 = vpack.c.b16 %v143, %v142
    %v157 = vpack.c.b16 %v145, %v144
    %v158 = vpack.c.b16 %v147, %v146
    %v159 = vpack.c.b16 %v149, %v148
    %v160 = vpack.c.b16 %v151, %v150
    %v161 = vpack.c.b16 %v153, %v152
    %v186 = vunpack.c.l.b16 %v99
    %v187 = vunpack.c.l.b16 %v100
    %v188 = vunpack.c.l.b16 %v101
    %v189 = vunpack.c.l.b16 %v102
    %v190 = vunpack.c.l.b16 %v103
    %v191 = vunpack.c.l.b16 %v104
    %v192 = vunpack.c.l.b16 %v105
    %v193 = vunpack.c.l.b16 %v106
    %v194 = vunpack.c.l.b16 %v107
    %v195 = vunpack.c.l.b16 %v108
    %v196 = vunpack.c.l.b16 %v109
    %v197 = vunpack.c.l.b16 %v110
    %v198 = vunpack.c.l.b16 %v111
    %v199 = vunpack.c.l.b16 %v112
    %v200 = vunpack.c.l.b16 %v113
    %v201 = vunpack.c.l.b16 %v114
    %v202 = vpack.c.b16 %v187, %v186
    %v203 = vpack.c.b16 %v189, %v188
    %v204 = vpack.c.b16 %v191, %v190
    %v205 = vpack.c.b16 %v193, %v192
    %v206 = vpack.c.b16 %v195, %v194
    %v207 = vpack.c.b16 %v197, %v196
    %v208 = vpack.c.b16 %v199, %v198
    %v209 = vpack.c.b16 %v201, %v200
    %218 = vmatprep.subr.bf16.mxu0 0
    %219 = vmatpush1.bf16.msra.mxu0 %v202
    %220 = vmatprep.subr.bf16.mxu0 0
    %221 = vmatpush1.bf16.msra.mxu0 %v203
    %222 = vmatprep.subr.bf16.mxu0 0
    %223 = vmatpush1.bf16.msra.mxu0 %v204
    %224 = vmatprep.subr.bf16.mxu0 0
    %225 = vmatpush1.bf16.msra.mxu0 %v205
    %226 = vmatprep.subr.bf16.mxu0 0
    %227 = vmatpush1.bf16.msra.mxu0 %v206
    %228 = vmatprep.subr.bf16.mxu0 0
    %229 = vmatpush1.bf16.msra.mxu0 %v207
    %230 = vmatprep.subr.bf16.mxu0 0
    %231 = vmatpush1.bf16.msra.mxu0 %v208
    %232 = vmatprep.subr.bf16.mxu0 0
    %233 = vmatpush1.bf16.msra.mxu0 %v209
    %234 = vmatprep.subr.bf16.mxu0 0
    %235 = vmatpush1.bf16.msra.mxu0 0
    %236 = vmatprep.subr.bf16.mxu0 0
    %237 = vmatpush1.bf16.msra.mxu0 0
    %238 = vmatprep.subr.bf16.mxu0 0
    %239 = vmatpush1.bf16.msra.mxu0 0
    %240 = vmatprep.subr.bf16.mxu0 0
    %241 = vmatpush1.bf16.msra.mxu0 0
    %242 = vmatprep.subr.bf16.mxu0 0
    %243 = vmatpush1.bf16.msra.mxu0 0
    %244 = vmatprep.subr.bf16.mxu0 0
    %245 = vmatpush1.bf16.msra.mxu0 0
    %246 = vmatprep.subr.bf16.mxu0 0
    %247 = vmatpush1.bf16.msra.mxu0 0
    %248 = vmatprep.subr.bf16.mxu0 0
    %249 = vmatpush1.bf16.msra.mxu0 0
    %250 = vmatprep.mubr.bf16.mxu0 0
    %251 = vmatmul.mubr.bf16.gmra.mrb[0].mxu0 %v154
    %v252 = vpop.f32.mrb[0].mxu0
    %v253 = vadd.f32 %v120, %v252
    %v254 = vpop.f32.mrb[0].mxu0
    %v255 = vpop.f32.mrb[0].mxu0
    %v256 = vadd.f32 %v120, %v255
    %v257 = vpop.f32.mrb[0].mxu0
    %258 = vmatprep.mubr.bf16.mxu0 0
    %259 = vmatmul.mubr.bf16.gmra.mrb[0].mxu0 %v155
    %v260 = vpop.f32.mrb[0].mxu0
    %v261 = vadd.f32 %v120, %v260
    %v262 = vpop.f32.mrb[0].mxu0
    %v263 = vpop.f32.mrb[0].mxu0
    %v264 = vadd.f32 %v120, %v263
    %v265 = vpop.f32.mrb[0].mxu0
    %266 = vmatprep.mubr.bf16.mxu0 0
    %267 = vmatmul.mubr.bf16.gmra.mrb[0].mxu0 %v156
    %v268 = vpop.f32.mrb[0].mxu0
    %v269 = vadd.f32 %v120, %v268
    %v270 = vpop.f32.mrb[0].mxu0
    %v271 = vpop.f32.mrb[0].mxu0
    %v272 = vadd.f32 %v120, %v271
    %v273 = vpop.f32.mrb[0].mxu0
    %274 = vmatprep.mubr.bf16.mxu0 0
    %275 = vmatmul.mubr.bf16.gmra.mrb[0].mxu0 %v157
    %v276 = vpop.f32.mrb[0].mxu0
    %v277 = vadd.f32 %v120, %v276
    %v278 = vpop.f32.mrb[0].mxu0
    %v279 = vpop.f32.mrb[0].mxu0
    %v280 = vadd.f32 %v120, %v279
    %v281 = vpop.f32.mrb[0].mxu0
    %282 = vmatprep.mubr.bf16.mxu0 0
    %283 = vmatmul.mubr.bf16.gmra.mrb[0].mxu0 %v158
    %v284 = vpop.f32.mrb[0].mxu0
    %v285 = vadd.f32 %v120, %v284
    %v286 = vpop.f32.mrb[0].mxu0
    %v287 = vpop.f32.mrb[0].mxu0
    %v288 = vadd.f32 %v120, %v287
    %v289 = vpop.f32.mrb[0].mxu0
    %290 = vmatprep.mubr.bf16.mxu0 0
    %291 = vmatmul.mubr.bf16.gmra.mrb[0].mxu0 %v159
    %v292 = vpop.f32.mrb[0].mxu0
    %v293 = vadd.f32 %v120, %v292
    %v294 = vpop.f32.mrb[0].mxu0
    %v295 = vpop.f32.mrb[0].mxu0
    %v296 = vadd.f32 %v120, %v295
    %v297 = vpop.f32.mrb[0].mxu0
    %298 = vmatprep.mubr.bf16.mxu0 0
    %299 = vmatmul.mubr.bf16.gmra.mrb[0].mxu0 %v160
    %v300 = vpop.f32.mrb[0].mxu0
    %v301 = vadd.f32 %v120, %v300
    %v302 = vpop.f32.mrb[0].mxu0
    %v303 = vpop.f32.mrb[0].mxu0
    %v304 = vadd.f32 %v120, %v303
    %v305 = vpop.f32.mrb[0].mxu0
    %306 = vmatprep.mubr.bf16.mxu0 0
    %307 = vmatmul.mubr.bf16.gmra.mrb[0].mxu0 %v161
    %v308 = vpop.f32.mrb[0].mxu0
    %v309 = vadd.f32 %v120, %v308
    %v310 = vpop.f32.mrb[0].mxu0
    %v311 = vpop.f32.mrb[0].mxu0
    %v312 = vadd.f32 %v120, %v311
    %v313 = vpop.f32.mrb[0].mxu0
    %314 = vdwg.mxu0
    %v315 = vpack.c.bf16 %v256, %v253
    %v316 = vpack.c.bf16 %v264, %v261
    %v317 = vpack.c.bf16 %v272, %v269
    %v318 = vpack.c.bf16 %v280, %v277
    %v319 = vpack.c.bf16 %v288, %v285
    %v320 = vpack.c.bf16 %v296, %v293
    %v321 = vpack.c.bf16 %v304, %v301
    %v322 = vpack.c.bf16 %v312, %v309
    %v323 = vld [vmem:[#allocation7] sm:$0xf]
    %v324 = vld [vmem:[#allocation7 + $0x4] sm:$0xf]
    %v325 = vld [vmem:[#allocation7 + $0x8] sm:$0xf]
    %v326 = vld [vmem:[#allocation7 + $0xc] sm:$0xf]
    %v327 = vld [vmem:[#allocation7 + $0x10] sm:$0xf]
    %v328 = vld [vmem:[#allocation7 + $0x14] sm:$0xf]
    %v329 = vld [vmem:[#allocation7 + $0x18] sm:$0xf]
    %v330 = vld [vmem:[#allocation7 + $0x1c] sm:$0xf]
    %v331 = vld [vmem:[#allocation7 + $0x20] sm:$0xf]
    %v332 = vld [vmem:[#allocation7 + $0x24] sm:$0xf]
    %v333 = vld [vmem:[#allocation7 + $0x28] sm:$0xf]
    %v334 = vld [vmem:[#allocation7 + $0x2c] sm:$0xf]
    %v335 = vld [vmem:[#allocation7 + $0x30] sm:$0xf]
    %v336 = vld [vmem:[#allocation7 + $0x34] sm:$0xf]
    %v337 = vld [vmem:[#allocation7 + $0x38] sm:$0xf]
    %v338 = vld [vmem:[#allocation7 + $0x3c] sm:$0xf]
    %v339 = vld [vmem:[%s4] sm:$0x1]
    %v341 = vlaneseq
    %v342 = vshrl.u32 %v341, 7
    %v343 = vsub.s32 0, %v342
    %v344 = vrot.slane %v339, %v343
    %v362 = vunpack.c.l.b16 %v323
    %v363 = vunpack.c.l.b16 %v324
    %v364 = vunpack.c.l.b16 %v325
    %v365 = vunpack.c.l.b16 %v326
    %v366 = vunpack.c.l.b16 %v327
    %v367 = vunpack.c.l.b16 %v328
    %v368 = vunpack.c.l.b16 %v329
    %v369 = vunpack.c.l.b16 %v330
    %v370 = vunpack.c.l.b16 %v331
    %v371 = vunpack.c.l.b16 %v332
    %v372 = vunpack.c.l.b16 %v333
    %v373 = vunpack.c.l.b16 %v334
    %v374 = vunpack.c.l.b16 %v335
    %v375 = vunpack.c.l.b16 %v336
    %v376 = vunpack.c.l.b16 %v337
    %v377 = vunpack.c.l.b16 %v338
    %v378 = vpack.c.b16 %v363, %v362
    %v379 = vpack.c.b16 %v365, %v364
    %v380 = vpack.c.b16 %v367, %v366
    %v381 = vpack.c.b16 %v369, %v368
    %v382 = vpack.c.b16 %v371, %v370
    %v383 = vpack.c.b16 %v373, %v372
    %v384 = vpack.c.b16 %v375, %v374
    %v385 = vpack.c.b16 %v377, %v376
    %394 = vmatprep.subr.bf16.mxu0 0
    %395 = vmatpush1.bf16.msra.mxu0 %v378
    %396 = vmatprep.subr.bf16.mxu0 0
    %397 = vmatpush1.bf16.msra.mxu0 %v379
    %398 = vmatprep.subr.bf16.mxu0 0
    %399 = vmatpush1.bf16.msra.mxu0 %v380
    %400 = vmatprep.subr.bf16.mxu0 0
    %401 = vmatpush1.bf16.msra.mxu0 %v381
    %402 = vmatprep.subr.bf16.mxu0 0
    %403 = vmatpush1.bf16.msra.mxu0 %v382
    %404 = vmatprep.subr.bf16.mxu0 0
    %405 = vmatpush1.bf16.msra.mxu0 %v383
    %406 = vmatprep.subr.bf16.mxu0 0
    %407 = vmatpush1.bf16.msra.mxu0 %v384
    %408 = vmatprep.subr.bf16.mxu0 0
    %409 = vmatpush1.bf16.msra.mxu0 %v385
    %410 = vmatprep.subr.bf16.mxu0 0
    %411 = vmatpush1.bf16.msra.mxu0 0
    %412 = vmatprep.subr.bf16.mxu0 0
    %413 = vmatpush1.bf16.msra.mxu0 0
    %414 = vmatprep.subr.bf16.mxu0 0
    %415 = vmatpush1.bf16.msra.mxu0 0
    %416 = vmatprep.subr.bf16.mxu0 0
    %417 = vmatpush1.bf16.msra.mxu0 0
    %418 = vmatprep.subr.bf16.mxu0 0
    %419 = vmatpush1.bf16.msra.mxu0 0
    %420 = vmatprep.subr.bf16.mxu0 0
    %421 = vmatpush1.bf16.msra.mxu0 0
    %422 = vmatprep.subr.bf16.mxu0 0
    %423 = vmatpush1.bf16.msra.mxu0 0
    %424 = vmatprep.subr.bf16.mxu0 0
    %425 = vmatpush1.bf16.msra.mxu0 0
    %426 = vmatprep.mubr.bf16.mxu0 0
    %427 = vmatmul.mubr.bf16.gmra.mrb[0].mxu0 %v315
    %v428 = vpop.f32.mrb[0].mxu0
    %v429 = vadd.f32 %v344, %v428
    %v430 = vpop.f32.mrb[0].mxu0
    %v431 = vpop.f32.mrb[0].mxu0
    %v432 = vadd.f32 %v344, %v431
    %v433 = vpop.f32.mrb[0].mxu0
    %434 = vmatprep.mubr.bf16.mxu0 0
    %435 = vmatmul.mubr.bf16.gmra.mrb[0].mxu0 %v316
    %v436 = vpop.f32.mrb[0].mxu0
    %v437 = vadd.f32 %v344, %v436
    %v438 = vpop.f32.mrb[0].mxu0
    %v439 = vpop.f32.mrb[0].mxu0
    %v440 = vadd.f32 %v344, %v439
    %v441 = vpop.f32.mrb[0].mxu0
    %442 = vmatprep.mubr.bf16.mxu0 0
    %443 = vmatmul.mubr.bf16.gmra.mrb[0].mxu0 %v317
    %v444 = vpop.f32.mrb[0].mxu0
    %v445 = vadd.f32 %v344, %v444
    %v446 = vpop.f32.mrb[0].mxu0
    %v447 = vpop.f32.mrb[0].mxu0
    %v448 = vadd.f32 %v344, %v447
    %v449 = vpop.f32.mrb[0].mxu0
    %450 = vmatprep.mubr.bf16.mxu0 0
    %451 = vmatmul.mubr.bf16.gmra.mrb[0].mxu0 %v318
    %v452 = vpop.f32.mrb[0].mxu0
    %v453 = vadd.f32 %v344, %v452
    %v454 = vpop.f32.mrb[0].mxu0
    %v455 = vpop.f32.mrb[0].mxu0
    %v456 = vadd.f32 %v344, %v455
    %v457 = vpop.f32.mrb[0].mxu0
    %458 = vmatprep.mubr.bf16.mxu0 0
    %459 = vmatmul.mubr.bf16.gmra.mrb[0].mxu0 %v319
    %v460 = vpop.f32.mrb[0].mxu0
    %v461 = vadd.f32 %v344, %v460
    %v462 = vpop.f32.mrb[0].mxu0
    %v463 = vpop.f32.mrb[0].mxu0
    %v464 = vadd.f32 %v344, %v463
    %v465 = vpop.f32.mrb[0].mxu0
    %466 = vmatprep.mubr.bf16.mxu0 0
    %467 = vmatmul.mubr.bf16.gmra.mrb[0].mxu0 %v320
    %v468 = vpop.f32.mrb[0].mxu0
    %v469 = vadd.f32 %v344, %v468
    %v470 = vpop.f32.mrb[0].mxu0
    %v471 = vpop.f32.mrb[0].mxu0
    %v472 = vadd.f32 %v344, %v471
    %v473 = vpop.f32.mrb[0].mxu0
    %474 = vmatprep.mubr.bf16.mxu0 0
    %475 = vmatmul.mubr.bf16.gmra.mrb[0].mxu0 %v321
    %v476 = vpop.f32.mrb[0].mxu0
    %v477 = vadd.f32 %v344, %v476
    %v478 = vpop.f32.mrb[0].mxu0
    %v479 = vpop.f32.mrb[0].mxu0
    %v480 = vadd.f32 %v344, %v479
    %v481 = vpop.f32.mrb[0].mxu0
    %482 = vmatprep.mubr.bf16.mxu0 0
    %483 = vmatmul.mubr.bf16.gmra.mrb[0].mxu0 %v322
    %v484 = vpop.f32.mrb[0].mxu0
    %v485 = vadd.f32 %v344, %v484
    %v486 = vpop.f32.mrb[0].mxu0
    %v487 = vpop.f32.mrb[0].mxu0
    %v488 = vadd.f32 %v344, %v487
    %v489 = vpop.f32.mrb[0].mxu0
    %490 = vdwg.mxu0
    %v491 = vmax.f32 %v429, 0.0
    %v492 = vmax.f32 %v432, 0.0
    %v493 = vmax.f32 %v437, 0.0
    %v494 = vmax.f32 %v440, 0.0
    %v495 = vmax.f32 %v445, 0.0
    %v496 = vmax.f32 %v448, 0.0
    %v497 = vmax.f32 %v453, 0.0
    %v498 = vmax.f32 %v456, 0.0
    %v499 = vmax.f32 %v461, 0.0
    %v500 = vmax.f32 %v464, 0.0
    %v501 = vmax.f32 %v469, 0.0
    %v502 = vmax.f32 %v472, 0.0
    %v503 = vmax.f32 %v477, 0.0
    %v504 = vmax.f32 %v480, 0.0
    %v505 = vmax.f32 %v485, 0.0
    %v506 = vmax.f32 %v488, 0.0
    %v507 = vpack.c.bf16 %v492, %v491
    %v508 = vpack.c.bf16 %v494, %v493
    %v509 = vpack.c.bf16 %v496, %v495
    %v510 = vpack.c.bf16 %v498, %v497
    %v511 = vpack.c.bf16 %v500, %v499
    %v512 = vpack.c.bf16 %v502, %v501
    %v513 = vpack.c.bf16 %v504, %v503
    %v514 = vpack.c.bf16 %v506, %v505
    %v515 = vld [vmem:[#allocation8] sm:$0xf]
    %v516 = vld [vmem:[#allocation8 + $0x4] sm:$0xf]
    %v517 = vld [vmem:[#allocation8 + $0x8] sm:$0xf]
    %v518 = vld [vmem:[#allocation8 + $0xc] sm:$0xf]
    %v519 = vld [vmem:[#allocation8 + $0x10] sm:$0xf]
    %v520 = vld [vmem:[#allocation8 + $0x14] sm:$0xf]
    %v521 = vld [vmem:[#allocation8 + $0x18] sm:$0xf]
    %v522 = vld [vmem:[#allocation8 + $0x1c] sm:$0xf]
    %v523 = vld [vmem:[#allocation8 + $0x20] sm:$0xf]
    %v524 = vld [vmem:[#allocation8 + $0x24] sm:$0xf]
    %v525 = vld [vmem:[#allocation8 + $0x28] sm:$0xf]
    %v526 = vld [vmem:[#allocation8 + $0x2c] sm:$0xf]
    %v527 = vld [vmem:[#allocation8 + $0x30] sm:$0xf]
    %v528 = vld [vmem:[#allocation8 + $0x34] sm:$0xf]
    %v529 = vld [vmem:[#allocation8 + $0x38] sm:$0xf]
    %v530 = vld [vmem:[#allocation8 + $0x3c] sm:$0xf]
    %v531 = vld [vmem:[%s6] sm:$0x1]
    %v533 = vlaneseq
    %v534 = vshrl.u32 %v533, 7
    %v535 = vsub.s32 0, %v534
    %v536 = vrot.slane %v531, %v535
    %v554 = vunpack.c.l.b16 %v515
    %v555 = vunpack.c.l.b16 %v516
    %v556 = vunpack.c.l.b16 %v517
    %v557 = vunpack.c.l.b16 %v518
    %v558 = vunpack.c.l.b16 %v519
    %v559 = vunpack.c.l.b16 %v520
    %v560 = vunpack.c.l.b16 %v521
    %v561 = vunpack.c.l.b16 %v522
    %v562 = vunpack.c.l.b16 %v523
    %v563 = vunpack.c.l.b16 %v524
    %v564 = vunpack.c.l.b16 %v525
    %v565 = vunpack.c.l.b16 %v526
    %v566 = vunpack.c.l.b16 %v527
    %v567 = vunpack.c.l.b16 %v528
    %v568 = vunpack.c.l.b16 %v529
    %v569 = vunpack.c.l.b16 %v530
    %v570 = vpack.c.b16 %v555, %v554
    %v571 = vpack.c.b16 %v557, %v556
    %v572 = vpack.c.b16 %v559, %v558
    %v573 = vpack.c.b16 %v561, %v560
    %v574 = vpack.c.b16 %v563, %v562
    %v575 = vpack.c.b16 %v565, %v564
    %v576 = vpack.c.b16 %v567, %v566
    %v577 = vpack.c.b16 %v569, %v568
    %586 = vmatprep.subr.bf16.mxu0 0
    %587 = vmatpush1.bf16.msra.mxu0 %v570
    %588 = vmatprep.subr.bf16.mxu0 0
    %589 = vmatpush1.bf16.msra.mxu0 %v571
    %590 = vmatprep.subr.bf16.mxu0 0
    %591 = vmatpush1.bf16.msra.mxu0 %v572
    %592 = vmatprep.subr.bf16.mxu0 0
    %593 = vmatpush1.bf16.msra.mxu0 %v573
    %594 = vmatprep.subr.bf16.mxu0 0
    %595 = vmatpush1.bf16.msra.mxu0 %v574
    %596 = vmatprep.subr.bf16.mxu0 0
    %597 = vmatpush1.bf16.msra.mxu0 %v575
    %598 = vmatprep.subr.bf16.mxu0 0
    %599 = vmatpush1.bf16.msra.mxu0 %v576
    %600 = vmatprep.subr.bf16.mxu0 0
    %601 = vmatpush1.bf16.msra.mxu0 %v577
    %602 = vmatprep.subr.bf16.mxu0 0
    %603 = vmatpush1.bf16.msra.mxu0 0
    %604 = vmatprep.subr.bf16.mxu0 0
    %605 = vmatpush1.bf16.msra.mxu0 0
    %606 = vmatprep.subr.bf16.mxu0 0
    %607 = vmatpush1.bf16.msra.mxu0 0
    %608 = vmatprep.subr.bf16.mxu0 0
    %609 = vmatpush1.bf16.msra.mxu0 0
    %610 = vmatprep.subr.bf16.mxu0 0
    %611 = vmatpush1.bf16.msra.mxu0 0
    %612 = vmatprep.subr.bf16.mxu0 0
    %613 = vmatpush1.bf16.msra.mxu0 0
    %614 = vmatprep.subr.bf16.mxu0 0
    %615 = vmatpush1.bf16.msra.mxu0 0
    %616 = vmatprep.subr.bf16.mxu0 0
    %617 = vmatpush1.bf16.msra.mxu0 0
    %618 = vmatprep.mubr.bf16.mxu0 0
    %619 = vmatmul.mubr.bf16.gmra.mrb[0].mxu0 %v507
    %v620 = vpop.f32.mrb[0].mxu0
    %v621 = vadd.f32 %v536, %v620
    %v622 = vpop.f32.mrb[0].mxu0
    %v623 = vpop.f32.mrb[0].mxu0
    %v624 = vadd.f32 %v536, %v623
    %v625 = vpop.f32.mrb[0].mxu0
    %626 = vmatprep.mubr.bf16.mxu0 0
    %627 = vmatmul.mubr.bf16.gmra.mrb[0].mxu0 %v508
    %v628 = vpop.f32.mrb[0].mxu0
    %v629 = vadd.f32 %v536, %v628
    %v630 = vpop.f32.mrb[0].mxu0
    %v631 = vpop.f32.mrb[0].mxu0
    %v632 = vadd.f32 %v536, %v631
    %v633 = vpop.f32.mrb[0].mxu0
    %634 = vmatprep.mubr.bf16.mxu0 0
    %635 = vmatmul.mubr.bf16.gmra.mrb[0].mxu0 %v509
    %v636 = vpop.f32.mrb[0].mxu0
    %v637 = vadd.f32 %v536, %v636
    %v638 = vpop.f32.mrb[0].mxu0
    %v639 = vpop.f32.mrb[0].mxu0
    %v640 = vadd.f32 %v536, %v639
    %v641 = vpop.f32.mrb[0].mxu0
    %642 = vmatprep.mubr.bf16.mxu0 0
    %643 = vmatmul.mubr.bf16.gmra.mrb[0].mxu0 %v510
    %v644 = vpop.f32.mrb[0].mxu0
    %v645 = vadd.f32 %v536, %v644
    %v646 = vpop.f32.mrb[0].mxu0
    %v647 = vpop.f32.mrb[0].mxu0
    %v648 = vadd.f32 %v536, %v647
    %v649 = vpop.f32.mrb[0].mxu0
    %650 = vmatprep.mubr.bf16.mxu0 0
    %651 = vmatmul.mubr.bf16.gmra.mrb[0].mxu0 %v511
    %v652 = vpop.f32.mrb[0].mxu0
    %v653 = vadd.f32 %v536, %v652
    %v654 = vpop.f32.mrb[0].mxu0
    %v655 = vpop.f32.mrb[0].mxu0
    %v656 = vadd.f32 %v536, %v655
    %v657 = vpop.f32.mrb[0].mxu0
    %658 = vmatprep.mubr.bf16.mxu0 0
    %659 = vmatmul.mubr.bf16.gmra.mrb[0].mxu0 %v512
    %v660 = vpop.f32.mrb[0].mxu0
    %v661 = vadd.f32 %v536, %v660
    %v662 = vpop.f32.mrb[0].mxu0
    %v663 = vpop.f32.mrb[0].mxu0
    %v664 = vadd.f32 %v536, %v663
    %v665 = vpop.f32.mrb[0].mxu0
    %666 = vmatprep.mubr.bf16.mxu0 0
    %667 = vmatmul.mubr.bf16.gmra.mrb[0].mxu0 %v513
    %v668 = vpop.f32.mrb[0].mxu0
    %v669 = vadd.f32 %v536, %v668
    %v670 = vpop.f32.mrb[0].mxu0
    %v671 = vpop.f32.mrb[0].mxu0
    %v672 = vadd.f32 %v536, %v671
    %v673 = vpop.f32.mrb[0].mxu0
    %674 = vmatprep.mubr.bf16.mxu0 0
    %675 = vmatmul.mubr.bf16.gmra.mrb[0].mxu0 %v514
    %v676 = vpop.f32.mrb[0].mxu0
    %v677 = vadd.f32 %v536, %v676
    %v678 = vpop.f32.mrb[0].mxu0
    %v679 = vpop.f32.mrb[0].mxu0
    %v680 = vadd.f32 %v536, %v679
    %v681 = vpop.f32.mrb[0].mxu0
    %682 = vdwg.mxu0
    %683 = vst [vmem:[#allocation10] sm:$0xff] %v621
    %684 = vst [vmem:[#allocation10 + $0x8] sm:$0xff] %v624
    %685 = vst [vmem:[#allocation10 + $0x10] sm:$0xff] %v629
    %686 = vst [vmem:[#allocation10 + $0x18] sm:$0xff] %v632
    %687 = vst [vmem:[#allocation10 + $0x20] sm:$0xff] %v637
    %688 = vst [vmem:[#allocation10 + $0x28] sm:$0xff] %v640
    %689 = vst [vmem:[#allocation10 + $0x30] sm:$0xff] %v645
    %690 = vst [vmem:[#allocation10 + $0x38] sm:$0xff] %v648
    %691 = vst [vmem:[#allocation10 + $0x40] sm:$0xff] %v653
    %692 = vst [vmem:[#allocation10 + $0x48] sm:$0xff] %v656
    %693 = vst [vmem:[#allocation10 + $0x50] sm:$0xff] %v661
    %694 = vst [vmem:[#allocation10 + $0x58] sm:$0xff] %v664
    %695 = vst [vmem:[#allocation10 + $0x60] sm:$0xff] %v669
    %696 = vst [vmem:[#allocation10 + $0x68] sm:$0xff] %v672
    %697 = vst [vmem:[#allocation10 + $0x70] sm:$0xff] %v677
    %698 = vst [vmem:[#allocation10 + $0x78] sm:$0xff] %v680
    // Predicated region
    $region46: #{tpu_custom_call.1} parent=1 // pred_check
      _
    $region47: #{tpu_custom_call.1} parent=1 // pred_check_branch
      %700 = sbr.rel (0) target = $region49
    $region48: #{tpu_custom_call.1} parent=1 // pred_region
      %s702 = ssub.s32 2048, 2048
      %703 = vsyncadd [#allocation4], %s702
      %s704 = sshll.u32 [#allocation10], 4
      %s705 = int_to_ptr.vmem [resolvable:$true] %s704
      %710 = dma.vmem_to_hbm [thread:$0]  %s705, 2048, %s7, [#allocation4], 128, 128, 8
    $region49: #{tpu_custom_call.1} parent=1 // pred_fallthru
      _
    // Predicated region
    $region50: #{tpu_custom_call.1} parent=1 // pred_check
      _
    $region51: #{tpu_custom_call.1} parent=1 // pred_check_branch
      %712 = sbr.rel (0) target = $region53
    $region52: #{tpu_custom_call.1} parent=1 // pred_region
      %713 = dma.done [#allocation4], 2048
    $region53: #{tpu_custom_call.1} parent=1 // pred_fallthru
      _
    %714 = vsyncpa [#allocation3], 1
    %715 = vsyncpa [#allocation6], 1
    %716 = vsyncpa [#allocation9], 1
    %717 = vsyncpa [#allocation4], 1

</llo_original>
